<compile_context>
chip_gen: v7x
topology: tpu7x:2x2x1
jax: 0.10.0
libtpu: 0.0.40
codegen_flags: <defaults>
</compile_context>

<pallas_src>
import jax
import jax.numpy as jnp
from jax.experimental import pallas as pl
from jax.experimental.pallas import tpu as pltpu

_LANE = 128


def _scalar_mul_kernel(c_ref, x_ref, o_ref):
    c = c_ref[0].astype(o_ref.dtype)
    x = x_ref[...]
    if x.dtype != o_ref.dtype:
        x = x.astype(o_ref.dtype)
    o_ref[...] = x * c


def _sublane_pack(itemsize: int) -> int:
    # Rows needed to fill one vreg's sublanes for a given element width.
    return {4: 8, 2: 16, 1: 32}.get(itemsize, 8)


def _choose_2d_view(n: int, pack: int):
    """Pick a (rows, cols) view of the flat size-n tensor.

    Preference order:
      1) lane-dense: cols | n, cols % 128 == 0, rows >= pack  (full vregs)
      2) sublane-dense: rows | n, rows % pack == 0, cols bounded (ragged lane
         tail handled by a full-width block)
      3) lane-dense with < pack rows (still uses all 128 lanes)
      4) (1, n) degenerate view (pathological sizes only; still correct)
    """
    best = None
    for cols in range(_LANE, 4096 + 1, _LANE):
        if n % cols == 0 and n // cols >= pack:
            best = cols
    if best is not None:
        return n // best, best

    for rows in range(pack, min(n, 32768) + 1, pack):
        if n % rows == 0 and n // rows <= 65536:
            return rows, n // rows

    for cols in range(_LANE, 4096 + 1, _LANE):
        if n % cols == 0:
            best = cols
    if best is not None:
        return n // best, best

    return 1, n


def _gen_params():
    """(tile_bytes, vmem_limit_bytes, input_buffer_count) per TPU generation."""
    kind = ""
    try:
        kind = jax.devices()[0].device_kind.lower()
    except Exception:  # pragma: no cover - defensive
        pass
    if "v7" in kind or "7x" in kind:
        return 8 << 20, 48 << 20, 3       # 5 x 8 MiB buffers ~ 40 MiB < 64 MiB
    if "v6" in kind:
        return 16 << 20, 96 << 20, 2      # 4 x 16 MiB = 64 MiB < 128 MiB
    return 2 << 20, 32 << 20, 2           # v5e / v5p / unknown: stay small


def _blocked_spec(block_shape, index_map, buffers):
    if buffers > 2:
        try:
            return pl.BlockSpec(block_shape, index_map,
                                pipeline_mode=pl.Buffered(buffers))
        except TypeError:  # older API without pipeline_mode: fall back cleanly
            pass
    return pl.BlockSpec(block_shape, index_map)


def scalar_forward(x: jax.Array, c=1) -> jax.Array:
    """Compute x * c with a Pallas TPU kernel. Matches PyTorch `Scalar.forward`."""
    orig_shape = x.shape
    # Output dtype follows JAX's promotion of `x * c` (handles int * float etc.).
    out_dtype = jax.eval_shape(
        lambda a: a * c, jax.ShapeDtypeStruct(x.shape, x.dtype)).dtype

    n = x.size
    if n == 0:
        return jnp.zeros(orig_shape, out_dtype)

    in_itemsize = jnp.dtype(x.dtype).itemsize
    out_itemsize = jnp.dtype(out_dtype).itemsize
    pack = _sublane_pack(min(in_itemsize, out_itemsize))
    elem_bytes = max(in_itemsize, out_itemsize)

    rows, cols = _choose_2d_view(n, pack)
    x2 = x.reshape(rows, cols)  # contiguous reshape: free view, no copy

    tile_bytes, vmem_limit, in_bufs = _gen_params()
    tile_elems = max(tile_bytes // elem_bytes, pack * _LANE)

    # Column block: lane-dense when possible, full (ragged) dim otherwise.
    if cols % _LANE == 0:
        tc = min(cols, 2048)
    elif cols * elem_bytes * max(min(rows, pack), 1) <= tile_bytes:
        tc = cols  # full array dim: always a legal block extent
    else:
        blk = (tile_elems // max(min(rows, pack), 1)) // _LANE * _LANE
        tc = max(_LANE, min(blk, 1 << 16))

    # Row block: multiple of the sublane packing, or the full dim.
    tr = max(pack, (tile_elems // tc) // pack * pack)
    if tr >= rows:
        tr = rows

    grid = (pl.cdiv(rows, tr), pl.cdiv(cols, tc))

    # Scalar `c` lives in SMEM (no recompilation per value; float carrier for
    # floating outputs, int carrier otherwise).
    carrier = jnp.float32 if jnp.issubdtype(out_dtype, jnp.inexact) else jnp.int32
    c_arr = jnp.asarray(c, dtype=carrier).reshape(1)

    out = pl.pallas_call(
        _scalar_mul_kernel,
        out_shape=jax.ShapeDtypeStruct((rows, cols), out_dtype),
        grid=grid,
        in_specs=[
            pl.BlockSpec(memory_space=pltpu.MemorySpace.SMEM),
            _blocked_spec((tr, tc), lambda i, j: (i, j), in_bufs),
        ],
        out_specs=pl.BlockSpec((tr, tc), lambda i, j: (i, j)),
        compiler_params=pltpu.CompilerParams(
            dimension_semantics=("parallel", "parallel"),
            vmem_limit_bytes=vmem_limit,
        ),
    )(c_arr, x2)

    return out.reshape(orig_shape)


if __name__ == "__main__":
    key = jax.random.PRNGKey(0)
    k1, k2, k3, k4 = jax.random.split(key, 4)

    # Primary test: small NCHW-style input consistent with a generic forward.
    x = jax.random.normal(k1, (2, 4, 16, 16), dtype=jnp.float32)
    y = jax.block_until_ready(scalar_forward(x, c=3.0))
    assert y.shape == x.shape and y.dtype == x.dtype
    assert jnp.allclose(y, x * 3.0, atol=1e-6, rtol=1e-6)

    # Ragged row blocks, cols > column block.
    x2 = jax.random.normal(k2, (1100, 1024), dtype=jnp.float32)
    y2 = jax.block_until_ready(scalar_forward(x2, c=-0.25))
    assert jnp.allclose(y2, x2 * -0.25, atol=1e-6, rtol=1e-6)

    # Sub-32-bit dtype (bf16), shape whose flat size is not a "nice" power of 2.
    x3 = jax.random.normal(k3, (4, 16, 48), dtype=jnp.bfloat16)
    y3 = jax.block_until_ready(scalar_forward(x3, c=0.5))
    assert y3.dtype == jnp.bfloat16
    assert jnp.allclose(y3.astype(jnp.float32), (x3 * 0.5).astype(jnp.float32),
                        atol=1e-2, rtol=1e-2)

    # Integer tensor * float scalar: output dtype follows JAX promotion (float).
    x4 = jax.random.randint(k4, (8, 128), -50, 50, dtype=jnp.int32)
    ref4 = x4 * 2.5
    y4 = jax.block_until_ready(scalar_forward(x4, c=2.5))
    assert y4.dtype == ref4.dtype
    assert jnp.allclose(y4, ref4, atol=1e-6, rtol=1e-6)

    # Pathological flat size (no divisor that is a multiple of 8): still correct.
    x5 = jax.random.normal(k1, (7, 13), dtype=jnp.float32)
    y5 = jax.block_until_ready(scalar_forward(x5))  # module default c=1
    assert jnp.allclose(y5, x5, atol=1e-6, rtol=1e-6)

    print("KERNEL_OK")
</pallas_src>

<mosaic_0001>
module attributes {stable_mosaic.version = 11 : i64} {
  func.func @_scalar_mul_kernel(%arg0: i32, %arg1: i32, %arg2: memref<1xf32, #tpu.memory_space<smem>>, %arg3: memref<8x256xf32, #tpu.memory_space<vmem>>, %arg4: memref<8x256xf32, #tpu.memory_space<vmem>>) attributes {dimension_semantics = [#tpu.dimension_semantics<parallel>, #tpu.dimension_semantics<parallel>], iteration_bounds = array<i64: 1, 1>, scalar_prefetch = 0 : i64, scratch_operands = 0 : i64, tpu.core_type = #tpu.core_type<tc>, window_params = [{transform_indices = @transform_0, window_bounds = array<i64: 1>}, {transform_indices = @transform_1, window_bounds = array<i64: 8, 256>}, {transform_indices = @transform_2, window_bounds = array<i64: 8, 256>}]} {
    %c0 = arith.constant 0 : index
    %0 = memref.load %arg2[%c0] : memref<1xf32, #tpu.memory_space<smem>>
    %c0_0 = arith.constant 0 : index
    %c0_1 = arith.constant 0 : index
    %1 = vector.load %arg3[%c0_0, %c0_1] : memref<8x256xf32, #tpu.memory_space<vmem>>, vector<8x256xf32>
    %2 = vector.broadcast %0 : f32 to vector<8x256xf32>
    %3 = arith.mulf %1, %2 : vector<8x256xf32>
    %c0_2 = arith.constant 0 : index
    %c0_3 = arith.constant 0 : index
    %4 = vector.load %arg4[%c0_2, %c0_3] : memref<8x256xf32, #tpu.memory_space<vmem>>, vector<8x256xf32>
    tpu.vector_store %arg4[%c0_2, %c0_3], %3 {strides = array<i32>} : memref<8x256xf32, #tpu.memory_space<vmem>>, vector<8x256xf32>,
    return
  }
  func.func @transform_0(%arg0: i32, %arg1: i32) -> i32 {
    %c0_i32 = arith.constant 0 : i32
    %c0_i32_0 = arith.constant 0 : i32
    return %c0_i32 : i32
  }
  func.func @transform_1(%arg0: i32, %arg1: i32) -> (i32, i32) {
    %c0_i32 = arith.constant 0 : i32
    return %arg0, %arg1 : i32, i32
  }
  func.func @transform_2(%arg0: i32, %arg1: i32) -> (i32, i32) {
    %c0_i32 = arith.constant 0 : i32
    return %arg0, %arg1 : i32, i32
  }
}

</mosaic_0001>

<llo_original>
// kernel: tpu_custom_call.1
$region0: #{tpu_custom_call.1}
  #allocation0 [shape = 'u32[]', space=smem, size = 0x4, offset = 0x4, fixed_abs, tag = 'smem constant byte address 0x4 - core index']
  #allocation1 [shape = 'u32[144,128]{1,0:T(1,128)}', space=vmem, size = 0x12000, scoped, tag = 'internal scratch']
  #allocation2 [shape = 'f32[1]{0:T(128)S(6)}', space=smem, size = 0x200, scoped, tag = 'scoped memory for tpu_custom_call.1']
  %s0 = inlined_call_operand.<no memory space> [shape: f32[1], index: 0, kind: input, shape index: {}]
  %s1 = inlined_call_operand.hbm [shape: f32[8,256], index: 1, kind: input, shape index: {}]
  %s2 = inlined_call_operand.hbm [shape: f32[8,256], index: 2, kind: output, shape index: {}]
  %s3 = sld [smem:[#allocation0]]
  $region22: #{tpu_custom_call.1} parent=0
    _
  %s5 = ssub.s32 1, %s3
  %s6 = scalar_select 0, %s5, %s3
  %7 = sst [smem:[#allocation2]] %s0
  $region1: #{tpu_custom_call.1} parent=0
    #allocation3 [shape = 'u8[8192]{0}', space=vmem, size = 0x2000, scoped, tag = 'input window, operand 1, single buffered']
    #allocation4 [shape = 's32[1]{0}', space=sflag, size = 0x4, scoped, tag = 'scoped memory for tpu_custom_call.1']
    #allocation5 [shape = 's32[1]{0}', space=sflag, size = 0x4, scoped, tag = 'scoped memory for tpu_custom_call.1']
    #allocation6 [shape = 'u8[8192]{0}', space=vmem, size = 0x2000, scoped, tag = 'output window, operand 0, single buffered']
    %8 = vsyncpa [#allocation4], 0
    %9 = vsyncpa [#allocation5], 0
    // Predicated region
    $region2: #{tpu_custom_call.1} parent=1 // pred_check
      _
    $region3: #{tpu_custom_call.1} parent=1 // pred_check_branch
      %11 = sbr.rel (0) target = $region5
    $region4: #{tpu_custom_call.1} parent=1 // pred_region
      _
    $region5: #{tpu_custom_call.1} parent=1 // pred_fallthru
      _
    // Predicated region
    $region6: #{tpu_custom_call.1} parent=1 // pred_check
      _
    $region7: #{tpu_custom_call.1} parent=1 // pred_check_branch
      %13 = sbr.rel (0) target = $region9
    $region8: #{tpu_custom_call.1} parent=1 // pred_region
      %s15 = ssub.s32 256, 256
      %16 = vsyncadd [#allocation4], %s15
      %s18 = sshll.u32 [#allocation3], 4
      %s19 = int_to_ptr.vmem [resolvable:$true] %s18
      %21 = dma.hbm_to_vmem [thread:$0]  %s1, 256, %s19, [#allocation4]
    $region9: #{tpu_custom_call.1} parent=1 // pred_fallthru
      _
    // Predicated region
    $region10: #{tpu_custom_call.1} parent=1 // pred_check
      _
    $region11: #{tpu_custom_call.1} parent=1 // pred_check_branch
      %23 = sbr.rel (0) target = $region13
    $region12: #{tpu_custom_call.1} parent=1 // pred_region
      %24 = dma.done [#allocation4], 256
    $region13: #{tpu_custom_call.1} parent=1 // pred_fallthru
      _
    %s25 = sld [smem:[#allocation2]]
    %v26 = vld [vmem:[#allocation3] sm:$0xff]
    %v27 = vld [vmem:[#allocation3 + $0x8] sm:$0xff]
    %v28 = vstv %s25
    %v29 = vmul.f32 %v26, %v28
    %v30 = vmul.f32 %v27, %v28
    %31 = vst [vmem:[#allocation6] sm:$0xff] %v29
    %32 = vst [vmem:[#allocation6 + $0x8] sm:$0xff] %v30
    // Predicated region
    $region14: #{tpu_custom_call.1} parent=1 // pred_check
      _
    $region15: #{tpu_custom_call.1} parent=1 // pred_check_branch
      %34 = sbr.rel (0) target = $region17
    $region16: #{tpu_custom_call.1} parent=1 // pred_region
      %s36 = ssub.s32 256, 256
      %37 = vsyncadd [#allocation5], %s36
      %s39 = sshll.u32 [#allocation6], 4
      %s40 = int_to_ptr.vmem [resolvable:$true] %s39
      %42 = dma.vmem_to_hbm [thread:$0]  %s40, 256, %s2, [#allocation5]
    $region17: #{tpu_custom_call.1} parent=1 // pred_fallthru
      _
    // Predicated region
    $region18: #{tpu_custom_call.1} parent=1 // pred_check
      _
    $region19: #{tpu_custom_call.1} parent=1 // pred_check_branch
      %44 = sbr.rel (0) target = $region21
    $region20: #{tpu_custom_call.1} parent=1 // pred_region
      %45 = dma.done [#allocation5], 256
    $region21: #{tpu_custom_call.1} parent=1 // pred_fallthru
      _
    %46 = vsyncpa [#allocation4], 1
    %47 = vsyncpa [#allocation5], 1

</llo_original>
